<compile_context>
chip_gen: v7x
topology: tpu7x:2x2x1
jax: 0.10.0
libtpu: 0.0.40
codegen_flags: <defaults>
</compile_context>

<pallas_src>
import functools
import math

import jax
import jax.numpy as jnp
from jax.experimental import pallas as pl
from jax.experimental.pallas import tpu as pltpu


# ---------------------------------------------------------------------------
# Pallas kernel: full MLP hot path (matmuls + bias + ReLU + Tanh) in one body.
# ---------------------------------------------------------------------------
def _fc_actor_kernel(num_layer, pack, *refs):
    # refs = (x_ref, w_0, b_0, ..., w_{L-1}, b_{L-1}, w_out, b_out, out_ref)
    x_ref = refs[0]
    out_ref = refs[-1]
    params = refs[1:-1]

    compute_dtype = params[0].dtype            # bf16 (default) or f32
    h = x_ref[...]                             # (batch_tile, in_dim), compute dtype
    for i in range(num_layer):                 # unrolled: full LLO scheduler visibility
        w = params[2 * i][...]                 # (d_in, d_out), compute dtype
        b = params[2 * i + 1][...]             # (1, d_out), f32
        a = jnp.dot(h, w, preferred_element_type=jnp.float32) + b   # f32 accumulation
        # Dropout(p) is identity at inference time.
        # TODO(synk): training-mode dropout (stochastic masking) not implemented.
        a = jnp.maximum(a, 0.0)                # ReLU in f32 (v5e has no bf16 VPU)
        h = a.astype(compute_dtype)            # back to MXU dtype for the next layer

    w_out = params[-2][...]
    b_out = params[-1][...]
    mu = jnp.tanh(jnp.dot(h, w_out, preferred_element_type=jnp.float32) + b_out)  # f32
    if pack > 1:
        bt, ad = mu.shape
        mu = mu.reshape(bt // pack, pack * ad)  # lane-dense: pack rows per 128-lane row
    out_ref[...] = mu.astype(out_ref.dtype)


# ---------------------------------------------------------------------------
# One-time capability probes (cached; the real pallas_call is never wrapped).
# ---------------------------------------------------------------------------
@functools.lru_cache(maxsize=1)
def _supports_single_buffered_weights():
    """Probe: pipeline_mode=pl.Buffered(1) on a grid-invariant operand compiles & runs."""
    def k(x_ref, w_ref, o_ref):
        o_ref[...] = jnp.dot(x_ref[...], w_ref[...], preferred_element_type=jnp.float32)

    try:
        w_spec = pl.BlockSpec((128, 128), lambda i: (0, 0), pipeline_mode=pl.Buffered(1))
        f = pl.pallas_call(
            k,
            out_shape=jax.ShapeDtypeStruct((16, 128), jnp.float32),
            grid_spec=pltpu.PrefetchScalarGridSpec(
                num_scalar_prefetch=0,
                grid=(2,),
                in_specs=[pl.BlockSpec((8, 128), lambda i: (i, 0)), w_spec],
                out_specs=pl.BlockSpec((8, 128), lambda i: (i, 0))),
        )
        jax.block_until_ready(f(jnp.zeros((16, 128), jnp.float32),
                                jnp.zeros((128, 128), jnp.float32)))
        return True
    except Exception:      # noqa: BLE001 -- one-time probe only
        return False


@functools.lru_cache(maxsize=1)
def _supports_lane_packed_store():
    """Probe: in-kernel (N, k) -> (N/p, 128) reshape (lane-dense packing) lowers & is row-major."""
    def k(x_ref, o_ref):
        o_ref[...] = x_ref[...].reshape(o_ref.shape)

    x = jnp.arange(128 * 8, dtype=jnp.float32).reshape(128, 8)
    try:
        out = pl.pallas_call(k, out_shape=jax.ShapeDtypeStruct((8, 128), jnp.float32))(x)
        jax.block_until_ready(out)
        return bool(jnp.array_equal(out.reshape(128, 8), x))
    except Exception:      # noqa: BLE001 -- one-time probe only
        return False


# ---------------------------------------------------------------------------
# Hardware / tiling helpers (VMEM- and generation-aware).
# ---------------------------------------------------------------------------
_MIN_ROWS_PER_CORE = 1024          # don't split across TensorCores below this


def _round_up(a, b):
    return ((a + b - 1) // b) * b


def _cdiv(a, b):
    return (a + b - 1) // b


def _lanes(d):
    # (8,128) lane padding: any operand with last dim < 128 still occupies 128 lanes.
    return _round_up(max(int(d), 1), 128)


def _vmem_physical_bytes():
    try:
        return int(pltpu.get_tpu_info().vmem_capacity_bytes)
    except Exception:      # noqa: BLE001 -- conservative default (v7x = 64 MiB)
        return 64 << 20


def _num_tensorcores():
    """Best effort: 2 on v7x / megacore parts, else 1 (1 is always safe)."""
    try:
        info = pltpu.get_tpu_info()
        for name in ("num_cores", "tensorcores_per_chip", "cores_per_chip", "num_tensorcores"):
            v = getattr(info, name, None)
            if v:
                return int(v)
    except Exception:      # noqa: BLE001
        pass
    try:
        d = jax.devices()[0]
        v = getattr(d, "num_cores", None)
        if v:
            return int(v)
        kind = str(getattr(d, "device_kind", "")).lower()
        if any(tag in kind for tag in ("v4", "v5p", "v7", "7x")):
            return 2
    except Exception:      # noqa: BLE001
        pass
    return 1


def _per_row_vmem_bytes(in_dim, hidden_dim, action_dim, compute_itemsize, pack):
    """VMEM bytes per batch row, including (8,128) lane padding."""
    in_b = 2 * compute_itemsize * _lanes(in_dim)                 # double-buffered input rows
    hid_b = (2 * 4 + compute_itemsize) * _lanes(hidden_dim)      # f32 pre-act/ReLU temps + h
    out_lanes = (_lanes(pack * action_dim) // pack) if pack > 1 else _lanes(action_dim)
    out_b = 2 * 4 * out_lanes                                    # double-buffered f32 output
    return in_b + hid_b + out_b


def _row_alignment(compute_itemsize, pack):
    align = 8 * max(1, 4 // compute_itemsize)                    # f32: 8 rows, bf16: 16 rows
    if pack > 1:
        p8 = pack * 8                                            # keep packed out rows 8-aligned
        align = align * p8 // math.gcd(align, p8)
    return align


def _plan_tiling(B, in_dim, hidden_dim, action_dim, weight_bytes, compute_itemsize, pack):
    budget = min(_vmem_physical_bytes() // 2, 24 << 20)
    per_row = _per_row_vmem_bytes(in_dim, hidden_dim, action_dim, compute_itemsize, pack)
    align = _row_alignment(compute_itemsize, pack)
    # Assume weights may be double-buffered (covers the no-Buffered(1) path).
    avail = budget - 2 * weight_bytes
    cap = max(align, (max(avail, 0) // per_row) // align * align)

    num_tc = _num_tensorcores()
    padded = _round_up(max(B, align), align)
    nsteps = _cdiv(padded, cap)                          # tile only when VMEM forces it
    if num_tc > 1 and padded >= num_tc * _MIN_ROWS_PER_CORE:
        nsteps = max(nsteps, num_tc)                     # engage both TCs (v7x / megacore)
        nsteps = _round_up(nsteps, num_tc)               # even split across cores
    batch_tile = _round_up(_cdiv(padded, nsteps), align)
    padded = batch_tile * nsteps
    return padded, batch_tile, nsteps, per_row, align


# ---------------------------------------------------------------------------
# Wrapper.
# ---------------------------------------------------------------------------
def fc_actor_forward(state, params, *, compute_dtype=jnp.bfloat16, batch_tile=None,
                     pack_output=True):
    """mu = tanh(MLP(state)) via a single Pallas kernel.

    state  : (B, in_dim) float32
    params : list of (W, b) pairs; W is (in_features, out_features), b is (1, out_features)
             or (out_features,).  Last pair is the output head (then tanh).
    """
    B, in_dim = state.shape
    hidden_dim = params[0][0].shape[1]
    action_dim = params[-1][0].shape[1]
    num_layer = len(params) - 1
    compute_dtype = jnp.dtype(compute_dtype)
    compute_itemsize = compute_dtype.itemsize

    # Lane-dense output packing: 128 // action_dim batch rows per 128-lane output row.
    pack = 1
    if pack_output and 0 < action_dim < 128 and 128 % action_dim == 0:
        if _supports_lane_packed_store():
            pack = 128 // action_dim

    # Cast weights + streamed activations to the compute dtype (bf16 by default: halves
    # HBM traffic, doubles MXU rate); biases and all post-matmul math stay in f32.
    flat_params = []
    for w, b in params:
        flat_params.append(w.astype(compute_dtype))
        flat_params.append(b.reshape(1, -1).astype(jnp.float32))
    weight_bytes = sum(int(p.size) * p.dtype.itemsize for p in flat_params)

    padded_B, auto_tile, nsteps, per_row, align = _plan_tiling(
        B, in_dim, hidden_dim, action_dim, weight_bytes, compute_itemsize, pack)
    if batch_tile is not None:
        batch_tile = _round_up(int(batch_tile), align)
        padded_B = _round_up(max(B, batch_tile), batch_tile)
        nsteps = padded_B // batch_tile
    else:
        batch_tile = auto_tile

    # Fail loudly (instead of silently spilling/OOMing, esp. on v7x's 64 MiB VMEM).
    est_vmem = 2 * weight_bytes + batch_tile * per_row
    phys = _vmem_physical_bytes()
    if est_vmem > phys:
        raise ValueError(
            f"fc_actor_forward: estimated VMEM use {est_vmem} B exceeds physical VMEM "
            f"{phys} B; reduce batch_tile / hidden_dim.")
    vmem_limit = int(min(phys, max(32 << 20, est_vmem + (8 << 20))))

    x = state.astype(compute_dtype)
    if padded_B != B:
        x = jnp.pad(x, ((0, padded_B - B), (0, 0)))

    flops = 2 * padded_B * (
        in_dim * hidden_dim
        + (num_layer - 1) * hidden_dim * hidden_dim
        + hidden_dim * action_dim)
    cost = pl.CostEstimate(
        flops=flops,
        transcendentals=padded_B * action_dim,                       # tanh
        bytes_accessed=compute_itemsize * padded_B * in_dim
        + 4 * padded_B * action_dim + weight_bytes)

    # Grid-invariant weights: single-buffered when supported (probed once).
    w_kwargs = {}
    if _supports_single_buffered_weights():
        w_kwargs = dict(pipeline_mode=pl.Buffered(1))

    in_specs = [pl.BlockSpec((batch_tile, in_dim), lambda i: (i, 0))]
    for p in flat_params:
        in_specs.append(pl.BlockSpec(p.shape, lambda i: (0, 0), **w_kwargs))

    if pack > 1:
        out_shape = jax.ShapeDtypeStruct((padded_B // pack, pack * action_dim), jnp.float32)
        out_spec = pl.BlockSpec((batch_tile // pack, pack * action_dim), lambda i: (i, 0))
    else:
        out_shape = jax.ShapeDtypeStruct((padded_B, action_dim), jnp.float32)
        out_spec = pl.BlockSpec((batch_tile, action_dim), lambda i: (i, 0))

    kernel = functools.partial(_fc_actor_kernel, num_layer, pack)
    out = pl.pallas_call(
        kernel,
        out_shape=out_shape,
        grid_spec=pltpu.PrefetchScalarGridSpec(
            num_scalar_prefetch=0,
            grid=(nsteps,),
            in_specs=in_specs,
            out_specs=out_spec),
        compiler_params=pltpu.CompilerParams(
            dimension_semantics=("parallel",),
            vmem_limit_bytes=vmem_limit),
        cost_estimate=cost,
    )(x, *flat_params)

    if pack > 1:
        out = out.reshape(padded_B, action_dim)
    return out if padded_B == B else out[:B]


# ---------------------------------------------------------------------------
# Deterministic parameter construction (mirrors nn.Linear default init shapes).
# ---------------------------------------------------------------------------
def build_fc_params(key, in_dim, hidden_dim, action_dim, num_layer):
    dims = [in_dim] + [hidden_dim] * num_layer + [action_dim]
    params = []
    for i in range(len(dims) - 1):
        fan_in, fan_out = dims[i], dims[i + 1]
        key, kw, kb = jax.random.split(key, 3)
        bound = 1.0 / jnp.sqrt(fan_in)
        # Stored as (in, out) so the kernel computes x @ W + b (== torch x @ W_t.T + b).
        w = jax.random.uniform(kw, (fan_in, fan_out), jnp.float32, -bound, bound)
        b = jax.random.uniform(kb, (1, fan_out), jnp.float32, -bound, bound)
        params.append((w, b))
    return params


def fc_actor_reference(state, params):
    """Pure-JAX f32 reference for correctness checking."""
    h = state
    for (w, b) in params[:-1]:
        h = jnp.maximum(h @ w + b, 0.0)
    w, b = params[-1]
    return jnp.tanh(h @ w + b)


if __name__ == "__main__":
    key = jax.random.PRNGKey(0)
    k_state, k_params, k_state2 = jax.random.split(key, 3)

    # Small shapes consistent with FcActor: obs_shape=(16,), action_dim=8,
    # cfg.num_layer=3, cfg.hidden_dim=32, cfg.layer_norm=0, cfg.dropout=0.5 (eval).
    batch, in_dim, hidden_dim, action_dim, num_layer = 16, 16, 32, 8, 3

    state = jax.random.normal(k_state, (batch, in_dim), jnp.float32)
    params = build_fc_params(k_params, in_dim, hidden_dim, action_dim, num_layer)
    mu_ref = fc_actor_reference(state, params)

    std = 0.1  # pass-through to TruncatedNormal(mu, std); distribution is host-side glue.
    # TODO(synk): TruncatedNormal sampling / exploration-module perturbation are host-side
    # glue in the PyTorch module and are not part of the kernel.

    # f32 compute path: tight check of kernel structure / packing / padding.
    mu_f32 = jax.block_until_ready(
        fc_actor_forward(state, params, compute_dtype=jnp.float32))
    assert mu_f32.shape == (batch, action_dim)
    assert jnp.allclose(mu_f32, mu_ref, atol=1e-5, rtol=1e-5), "Pallas mismatch (f32 path)"

    # Default bf16-fed path (f32 MXU accumulation): looser tolerance.
    mu_bf16 = jax.block_until_ready(fc_actor_forward(state, params))
    assert mu_bf16.shape == (batch, action_dim)
    assert jnp.allclose(mu_bf16, mu_ref, atol=2e-2), "Pallas mismatch (bf16 path)"

    # Ragged larger batch: exercises sublane padding, lane-dense packed output, and the
    # multi-step "parallel" grid on multi-TensorCore parts.
    big_batch = 1000
    state_big = jax.random.normal(k_state2, (big_batch, in_dim), jnp.float32)
    mu_big = jax.block_until_ready(fc_actor_forward(state_big, params))
    mu_big_ref = fc_actor_reference(state_big, params)
    assert mu_big.shape == (big_batch, action_dim)
    assert jnp.allclose(mu_big, mu_big_ref, atol=2e-2), "Pallas mismatch (big batch)"

    print("KERNEL_OK")
</pallas_src>

<mosaic_0001>
module attributes {stable_mosaic.version = 11 : i64} {
  func.func @k(%arg0: memref<128x8xf32, #tpu.memory_space<vmem>>, %arg1: memref<8x128xf32, #tpu.memory_space<vmem>>) attributes {dimension_semantics = [], scalar_prefetch = 0 : i64, scratch_operands = 0 : i64, tpu.core_type = #tpu.core_type<tc>} {
    %c0 = arith.constant 0 : index
    %c0_0 = arith.constant 0 : index
    %0 = vector.load %arg0[%c0, %c0_0] : memref<128x8xf32, #tpu.memory_space<vmem>>, vector<128x8xf32>
    %1 = vector.shape_cast %0 : vector<128x8xf32> to vector<8x128xf32>
    %c0_1 = arith.constant 0 : index
    %c0_2 = arith.constant 0 : index
    %2 = vector.load %arg1[%c0_1, %c0_2] : memref<8x128xf32, #tpu.memory_space<vmem>>, vector<8x128xf32>
    tpu.vector_store %arg1[%c0_1, %c0_2], %1 {strides = array<i32>} : memref<8x128xf32, #tpu.memory_space<vmem>>, vector<8x128xf32>,
    return
  }
}

module attributes {stable_mosaic.version = 11 : i64} {
  func.func @k(%arg0: i32, %arg1: memref<8x128xf32, #tpu.memory_space<vmem>>, %arg2: memref<128x128xf32, #tpu.memory_space<vmem>>, %arg3: memref<8x128xf32, #tpu.memory_space<vmem>>) attributes {dimension_semantics = [#tpu.dimension_semantics<arbitrary>], iteration_bounds = array<i64: 2>, scalar_prefetch = 0 : i64, scratch_operands = 0 : i64, tpu.core_type = #tpu.core_type<tc>, window_params = [{transform_indices = @transform_0, window_bounds = array<i64: 8, 128>}, {pipeline_mode = #tpu.pipeline_mode<synchronous>, transform_indices = @transform_1, window_bounds = array<i64: 128, 128>}, {transform_indices = @transform_2, window_bounds = array<i64: 8, 128>}]} {
    %c0 = arith.constant 0 : index
    %c0_0 = arith.constant 0 : index
    %0 = vector.load %arg1[%c0, %c0_0] : memref<8x128xf32, #tpu.memory_space<vmem>>, vector<8x128xf32>
    %c0_1 = arith.constant 0 : index
    %c0_2 = arith.constant 0 : index
    %1 = vector.load %arg2[%c0_1, %c0_2] : memref<128x128xf32, #tpu.memory_space<vmem>>, vector<128x128xf32>
    %cst = arith.constant dense<0.000000e+00> : vector<8x128xf32>
    %2 = tpu.matmul %0, %1, %cst {dimension_numbers = #tpu.dot_dimension_numbers<[1], [0], [0], [1], [0, 0, 1, 1], [], []>} : vector<8x128xf32>, vector<128x128xf32>, vector<8x128xf32> -> vector<8x128xf32>
    %c0_3 = arith.constant 0 : index
    %c0_4 = arith.constant 0 : index
    %3 = vector.load %arg3[%c0_3, %c0_4] : memref<8x128xf32, #tpu.memory_space<vmem>>, vector<8x128xf32>
    tpu.vector_store %arg3[%c0_3, %c0_4], %2 {strides = array<i32>} : memref<8x128xf32, #tpu.memory_space<vmem>>, vector<8x128xf32>,
    return
  }
  func.func @transform_0(%arg0: i32) -> (i32, i32) {
    %c0_i32 = arith.constant 0 : i32
    %c0_i32_0 = arith.constant 0 : i32
    return %arg0, %c0_i32 : i32, i32
  }
  func.func @transform_1(%arg0: i32) -> (i32, i32) {
    %c0_i32 = arith.constant 0 : i32
    %c0_i32_0 = arith.constant 0 : i32
    %c0_i32_1 = arith.constant 0 : i32
    return %c0_i32, %c0_i32_0 : i32, i32
  }
  func.func @transform_2(%arg0: i32) -> (i32, i32) {
    %c0_i32 = arith.constant 0 : i32
    %c0_i32_0 = arith.constant 0 : i32
    return %arg0, %c0_i32 : i32, i32
  }
}

module attributes {stable_mosaic.version = 11 : i64} {
  func.func @_fc_actor_kernel(%arg0: i32, %arg1: memref<16x16xf32, #tpu.memory_space<vmem>>, %arg2: memref<16x32xf32, #tpu.memory_space<vmem>>, %arg3: memref<1x32xf32, #tpu.memory_space<vmem>>, %arg4: memref<32x32xf32, #tpu.memory_space<vmem>>, %arg5: memref<1x32xf32, #tpu.memory_space<vmem>>, %arg6: memref<32x32xf32, #tpu.memory_space<vmem>>, %arg7: memref<1x32xf32, #tpu.memory_space<vmem>>, %arg8: memref<32x8xf32, #tpu.memory_space<vmem>>, %arg9: memref<1x8xf32, #tpu.memory_space<vmem>>, %arg10: memref<16x8xf32, #tpu.memory_space<vmem>>) attributes {dimension_semantics = [#tpu.dimension_semantics<parallel>], iteration_bounds = array<i64: 1>, scalar_prefetch = 0 : i64, scratch_operands = 0 : i64, tpu.core_type = #tpu.core_type<tc>, window_params = [{transform_indices = @transform_0, window_bounds = array<i64: 16, 16>}, {pipeline_mode = #tpu.pipeline_mode<synchronous>, transform_indices = @transform_1, window_bounds = array<i64: 16, 32>}, {pipeline_mode = #tpu.pipeline_mode<synchronous>, transform_indices = @transform_2, window_bounds = array<i64: 1, 32>}, {pipeline_mode = #tpu.pipeline_mode<synchronous>, transform_indices = @transform_3, window_bounds = array<i64: 32, 32>}, {pipeline_mode = #tpu.pipeline_mode<synchronous>, transform_indices = @transform_4, window_bounds = array<i64: 1, 32>}, {pipeline_mode = #tpu.pipeline_mode<synchronous>, transform_indices = @transform_5, window_bounds = array<i64: 32, 32>}, {pipeline_mode = #tpu.pipeline_mode<synchronous>, transform_indices = @transform_6, window_bounds = array<i64: 1, 32>}, {pipeline_mode = #tpu.pipeline_mode<synchronous>, transform_indices = @transform_7, window_bounds = array<i64: 32, 8>}, {pipeline_mode = #tpu.pipeline_mode<synchronous>, transform_indices = @transform_8, window_bounds = array<i64: 1, 8>}, {transform_indices = @transform_9, window_bounds = array<i64: 16, 8>}]} {
    %c0 = arith.constant 0 : index
    %c0_0 = arith.constant 0 : index
    %0 = vector.load %arg1[%c0, %c0_0] : memref<16x16xf32, #tpu.memory_space<vmem>>, vector<16x16xf32>
    %c0_1 = arith.constant 0 : index
    %c0_2 = arith.constant 0 : index
    %1 = vector.load %arg2[%c0_1, %c0_2] : memref<16x32xf32, #tpu.memory_space<vmem>>, vector<16x32xf32>
    %c0_3 = arith.constant 0 : index
    %c0_4 = arith.constant 0 : index
    %2 = vector.load %arg3[%c0_3, %c0_4] : memref<1x32xf32, #tpu.memory_space<vmem>>, vector<1x32xf32>
    %cst = arith.constant dense<0.000000e+00> : vector<16x32xf32>
    %3 = tpu.matmul %0, %1, %cst {dimension_numbers = #tpu.dot_dimension_numbers<[1], [0], [0], [1], [0, 0, 1, 1], [], []>} : vector<16x16xf32>, vector<16x32xf32>, vector<16x32xf32> -> vector<16x32xf32>
    %4 = vector.broadcast %2 : vector<1x32xf32> to vector<16x32xf32>
    %5 = arith.addf %3, %4 : vector<16x32xf32>
    %cst_5 = arith.constant 0.000000e+00 : f32
    %6 = vector.broadcast %cst_5 : f32 to vector<16x32xf32>
    %7 = arith.maximumf %5, %6 : vector<16x32xf32>
    %c0_6 = arith.constant 0 : index
    %c0_7 = arith.constant 0 : index
    %8 = vector.load %arg4[%c0_6, %c0_7] : memref<32x32xf32, #tpu.memory_space<vmem>>, vector<32x32xf32>
    %c0_8 = arith.constant 0 : index
    %c0_9 = arith.constant 0 : index
    %9 = vector.load %arg5[%c0_8, %c0_9] : memref<1x32xf32, #tpu.memory_space<vmem>>, vector<1x32xf32>
    %cst_10 = arith.constant dense<0.000000e+00> : vector<16x32xf32>
    %10 = tpu.matmul %7, %8, %cst_10 {dimension_numbers = #tpu.dot_dimension_numbers<[1], [0], [0], [1], [0, 0, 1, 1], [], []>} : vector<16x32xf32>, vector<32x32xf32>, vector<16x32xf32> -> vector<16x32xf32>
    %11 = vector.broadcast %9 : vector<1x32xf32> to vector<16x32xf32>
    %12 = arith.addf %10, %11 : vector<16x32xf32>
    %cst_11 = arith.constant 0.000000e+00 : f32
    %13 = vector.broadcast %cst_11 : f32 to vector<16x32xf32>
    %14 = arith.maximumf %12, %13 : vector<16x32xf32>
    %c0_12 = arith.constant 0 : index
    %c0_13 = arith.constant 0 : index
    %15 = vector.load %arg6[%c0_12, %c0_13] : memref<32x32xf32, #tpu.memory_space<vmem>>, vector<32x32xf32>
    %c0_14 = arith.constant 0 : index
    %c0_15 = arith.constant 0 : index
    %16 = vector.load %arg7[%c0_14, %c0_15] : memref<1x32xf32, #tpu.memory_space<vmem>>, vector<1x32xf32>
    %cst_16 = arith.constant dense<0.000000e+00> : vector<16x32xf32>
    %17 = tpu.matmul %14, %15, %cst_16 {dimension_numbers = #tpu.dot_dimension_numbers<[1], [0], [0], [1], [0, 0, 1, 1], [], []>} : vector<16x32xf32>, vector<32x32xf32>, vector<16x32xf32> -> vector<16x32xf32>
    %18 = vector.broadcast %16 : vector<1x32xf32> to vector<16x32xf32>
    %19 = arith.addf %17, %18 : vector<16x32xf32>
    %cst_17 = arith.constant 0.000000e+00 : f32
    %20 = vector.broadcast %cst_17 : f32 to vector<16x32xf32>
    %21 = arith.maximumf %19, %20 : vector<16x32xf32>
    %c0_18 = arith.constant 0 : index
    %c0_19 = arith.constant 0 : index
    %22 = vector.load %arg8[%c0_18, %c0_19] : memref<32x8xf32, #tpu.memory_space<vmem>>, vector<32x8xf32>
    %c0_20 = arith.constant 0 : index
    %c0_21 = arith.constant 0 : index
    %23 = vector.load %arg9[%c0_20, %c0_21] : memref<1x8xf32, #tpu.memory_space<vmem>>, vector<1x8xf32>
    %cst_22 = arith.constant dense<0.000000e+00> : vector<16x8xf32>
    %24 = tpu.matmul %21, %22, %cst_22 {dimension_numbers = #tpu.dot_dimension_numbers<[1], [0], [0], [1], [0, 0, 1, 1], [], []>} : vector<16x32xf32>, vector<32x8xf32>, vector<16x8xf32> -> vector<16x8xf32>
    %25 = vector.broadcast %23 : vector<1x8xf32> to vector<16x8xf32>
    %26 = arith.addf %24, %25 : vector<16x8xf32>
    %27 = math.tanh %26 : vector<16x8xf32>
    %c0_23 = arith.constant 0 : index
    %c0_24 = arith.constant 0 : index
    %28 = vector.load %arg10[%c0_23, %c0_24] : memref<16x8xf32, #tpu.memory_space<vmem>>, vector<16x8xf32>
    tpu.vector_store %arg10[%c0_23, %c0_24], %27 {strides = array<i32>} : memref<16x8xf32, #tpu.memory_space<vmem>>, vector<16x8xf32>,
    return
  }
  func.func @transform_0(%arg0: i32) -> (i32, i32) {
    %c0_i32 = arith.constant 0 : i32
    %c0_i32_0 = arith.constant 0 : i32
    return %arg0, %c0_i32 : i32, i32
  }
  func.func @transform_1(%arg0: i32) -> (i32, i32) {
    %c0_i32 = arith.constant 0 : i32
    %c0_i32_0 = arith.constant 0 : i32
    %c0_i32_1 = arith.constant 0 : i32
    return %c0_i32, %c0_i32_0 : i32, i32
  }
  func.func @transform_2(%arg0: i32) -> (i32, i32) {
    %c0_i32 = arith.constant 0 : i32
    %c0_i32_0 = arith.constant 0 : i32
    %c0_i32_1 = arith.constant 0 : i32
    return %c0_i32, %c0_i32_0 : i32, i32
  }
  func.func @transform_3(%arg0: i32) -> (i32, i32) {
    %c0_i32 = arith.constant 0 : i32
    %c0_i32_0 = arith.constant 0 : i32
    %c0_i32_1 = arith.constant 0 : i32
    return %c0_i32, %c0_i32_0 : i32, i32
  }
  func.func @transform_4(%arg0: i32) -> (i32, i32) {
    %c0_i32 = arith.constant 0 : i32
    %c0_i32_0 = arith.constant 0 : i32
    %c0_i32_1 = arith.constant 0 : i32
    return %c0_i32, %c0_i32_0 : i32, i32
  }
  func.func @transform_5(%arg0: i32) -> (i32, i32) {
    %c0_i32 = arith.constant 0 : i32
    %c0_i32_0 = arith.constant 0 : i32
    %c0_i32_1 = arith.constant 0 : i32
    return %c0_i32, %c0_i32_0 : i32, i32
  }
  func.func @transform_6(%arg0: i32) -> (i32, i32) {
    %c0_i32 = arith.constant 0 : i32
    %c0_i32_0 = arith.constant 0 : i32
    %c0_i32_1 = arith.constant 0 : i32
    return %c0_i32, %c0_i32_0 : i32, i32
  }
  func.func @transform_7(%arg0: i32) -> (i32, i32) {
    %c0_i32 = arith.constant 0 : i32
    %c0_i32_0 = arith.constant 0 : i32
    %c0_i32_1 = arith.constant 0 : i32
    return %c0_i32, %c0_i32_0 : i32, i32
  }
  func.func @transform_8(%arg0: i32) -> (i32, i32) {
    %c0_i32 = arith.constant 0 : i32
    %c0_i32_0 = arith.constant 0 : i32
    %c0_i32_1 = arith.constant 0 : i32
    return %c0_i32, %c0_i32_0 : i32, i32
  }
  func.func @transform_9(%arg0: i32) -> (i32, i32) {
    %c0_i32 = arith.constant 0 : i32
    %c0_i32_0 = arith.constant 0 : i32
    return %arg0, %c0_i32 : i32, i32
  }
}

</mosaic_0001>

<llo_original>
// kernel: tpu_custom_call.1
$region0: #{tpu_custom_call.1}
  #allocation0 [shape = 'u32[]', space=smem, size = 0x4, offset = 0x4, fixed_abs, tag = 'smem constant byte address 0x4 - core index']
  #allocation1 [shape = 'u32[144,128]{1,0:T(1,128)}', space=vmem, size = 0x12000, scoped, tag = 'internal scratch']
  %s0 = inlined_call_operand.hbm [shape: f32[16,128], index: 0, kind: input, shape index: {}]
  %s1 = inlined_call_operand.hbm [shape: f32[128,128], index: 1, kind: input, shape index: {}]
  %s2 = inlined_call_operand.hbm [shape: f32[16,128], index: 2, kind: output, shape index: {}]
  %s3 = sld [smem:[#allocation0]]
  $region49: #{tpu_custom_call.1} parent=0
    _
  %s5 = ssub.s32 1, %s3
  %s6 = scalar_select 0, %s5, %s3
  $region1: #{tpu_custom_call.1} parent=0
    #allocation2 [shape = 'u8[8192]{0}', space=vmem, size = 0x2000, scoped, tag = 'input window, operand 0']
    #allocation3 [shape = 's32[2]{0}', space=sflag, size = 0x8, scoped, tag = 'scoped memory for tpu_custom_call.1']
    #allocation4 [shape = 's32[2]{0}', space=sflag, size = 0x8, scoped, tag = 'scoped memory for tpu_custom_call.1']
    #allocation5 [shape = 'u8[65536]{0}', space=vmem, size = 0x10000, scoped, tag = 'input window, operand 1, single buffered']
    #allocation6 [shape = 's32[1]{0}', space=sflag, size = 0x4, scoped, tag = 'scoped memory for tpu_custom_call.1']
    #allocation7 [shape = 'u8[8192]{0}', space=vmem, size = 0x2000, scoped, tag = 'output window, operand 0']
    %7 = vsyncpa [#allocation3], 0
    %s8 = scalar_lea.sflag [#allocation3], 1
    %9 = vsyncpa %s8, 0
    %10 = vsyncpa [#allocation6], 0
    %11 = vsyncpa [#allocation4], 0
    %s12 = scalar_lea.sflag [#allocation4], 1
    %13 = vsyncpa %s12, 0
    loop: start=0, step=1, limit=4
    $region2: #{tpu_custom_call.1} parent=1 // loop_pre_header
      _
    $region3: #{tpu_custom_call.1} parent=1 // loop_header
      %s15 = sphi 0, %s19
      %p16 = scmp.ge.s32.totalorder %s15, 4
      %s25 = sphi 0, %s27
      %s28 = sphi 0, %s25
      %s29 = sphi 0, %s28
      %s45 = sphi 0, %s29
      %s49 = sphi 0, %s49
      %s51 = sphi 0, %s49
      %s52 = sphi 0, %s51
      %s66 = sphi 0, %s52
      %s72 = sphi 0, %s74
      %s75 = sphi 0, %s72
      %s76 = sphi 0, %s75
      %s92 = sphi 0, %s76
    $region4: #{tpu_custom_call.1} parent=1 // loop_header_branch
      %18 = sbr.rel (%p16) target = $region8
    $region5: #{tpu_custom_call.1} parent=1 // loop_body
      %s20 = ssub.s32 %s15, 1
      %s21 = ssub.s32 %s15, 2
      %s22 = sadd.s32 %s15, 1
      %s23 = ssub.s32 %s15, %s22
      %p24 = scmp.eq.s32.totalorder %s23, 0
      %s26 = sadd.s32 %s25, 1
      %s27 = scalar_select %p24, %s25, %s26
      %p30 = pneg %p24
      %p31 = scmp.eq.s32.totalorder %s15, 1
      %p32 = por %p30, %p31
      %p33 = scmp.ne.s32.totalorder %s25, %s28
      %p34 = scmp.eq.s32.totalorder %s15, 0
      %p35 = por %p33, %p34
      %p36 = scmp.ne.s32.totalorder %s25, %s28
      %p37 = scmp.eq.s32.totalorder %s20, 1
      %p38 = por %p36, %p37
      %p39 = scmp.ne.s32.totalorder %s28, %s29
      %p40 = scmp.eq.s32.totalorder %s20, 0
      %p41 = por %p39, %p40
      %p42 = scmp.ne.s32.totalorder %s28, %s29
      %p43 = scmp.eq.s32.totalorder %s21, 1
      %p44 = por %p42, %p43
      %p46 = scmp.ne.s32.totalorder %s29, %s45
      %p47 = scmp.eq.s32.totalorder %s21, 0
      %p48 = por %p46, %p47
      %s50 = sadd.s32 %s49, 1
      %p53 = scmp.eq.s32.totalorder %s15, 1
      %p54 = scmp.ne.s32.totalorder %s49, %s51
      %p55 = scmp.eq.s32.totalorder %s15, 0
      %p56 = por %p54, %p55
      %p57 = scmp.ne.s32.totalorder %s49, %s51
      %p58 = scmp.eq.s32.totalorder %s20, 1
      %p59 = por %p57, %p58
      %p60 = scmp.ne.s32.totalorder %s51, %s52
      %p61 = scmp.eq.s32.totalorder %s20, 0
      %p62 = por %p60, %p61
      %p63 = scmp.ne.s32.totalorder %s51, %s52
      %p64 = scmp.eq.s32.totalorder %s21, 1
      %p65 = por %p63, %p64
      %p67 = scmp.ne.s32.totalorder %s52, %s66
      %p68 = scmp.eq.s32.totalorder %s21, 0
      %p69 = por %p67, %p68
      %s70 = ssub.s32 %s15, %s22
      %p71 = scmp.eq.s32.totalorder %s70, 0
      %s73 = sadd.s32 %s72, 1
      %s74 = scalar_select %p71, %s72, %s73
      %p77 = pneg %p71
      %p78 = scmp.eq.s32.totalorder %s15, 1
      %p79 = por %p77, %p78
      %p80 = scmp.ne.s32.totalorder %s72, %s75
      %p81 = scmp.eq.s32.totalorder %s15, 0
      %p82 = por %p80, %p81
      %p83 = scmp.ne.s32.totalorder %s72, %s75
      %p84 = scmp.eq.s32.totalorder %s20, 1
      %p85 = por %p83, %p84
      %p86 = scmp.ne.s32.totalorder %s75, %s76
      %p87 = scmp.eq.s32.totalorder %s20, 0
      %p88 = por %p86, %p87
      %p89 = scmp.ne.s32.totalorder %s75, %s76
      %p90 = scmp.eq.s32.totalorder %s21, 1
      %p91 = por %p89, %p90
      %p93 = scmp.ne.s32.totalorder %s76, %s92
      %p94 = scmp.eq.s32.totalorder %s21, 0
      %p95 = por %p93, %p94
      %p96 = scmp.le.s32.totalorder 1, %s15
      %p97 = scmp.lt.s32.totalorder %s15, 3
      %p98 = pnand %p96, %p97
      %p99 = pneg %p98
      // Predicated region
      $region9: #{tpu_custom_call.1} parent=5 // pred_check
        _
      $region10: #{tpu_custom_call.1} parent=5 // pred_check_branch
        %101 = sbr.rel (%p98) target = $region12
      $region11: #{tpu_custom_call.1} parent=5 // pred_region
        %s102 = ssub.s32 %s15, 1
        // Predicated region
        $region13: #{tpu_custom_call.1} parent=11 // pred_check
          %p103 = pneg %p62
        $region14: #{tpu_custom_call.1} parent=11 // pred_check_branch
          %105 = sbr.rel (%p103) target = $region16
        $region15: #{tpu_custom_call.1} parent=11 // pred_region
          %s107 = ssub.s32 2048, 2048
          %108 = vsyncadd [#allocation6], %s107
          %s109 = sshll.u32 [#allocation5], 4
          %s110 = int_to_ptr.vmem [resolvable:$true] %s109
          %115 = dma.hbm_to_vmem [thread:$0]  %s1, 2048, %s110, [#allocation6], 128, 128, 8
        $region16: #{tpu_custom_call.1} parent=11 // pred_fallthru
          _
      $region12: #{tpu_custom_call.1} parent=5 // pred_fallthru
        _
      %p116 = scmp.lt.s32.totalorder %s15, 2
      // Predicated region
      $region17: #{tpu_custom_call.1} parent=5 // pred_check
        %p117 = pneg %p116
      $region18: #{tpu_custom_call.1} parent=5 // pred_check_branch
        %119 = sbr.rel (%p117) target = $region20
      $region19: #{tpu_custom_call.1} parent=5 // pred_region
        // Predicated region
        $region21: #{tpu_custom_call.1} parent=19 // pred_check
          %p120 = pneg %p35
        $region22: #{tpu_custom_call.1} parent=19 // pred_check_branch
          %122 = sbr.rel (%p120) target = $region24
        $region23: #{tpu_custom_call.1} parent=19 // pred_region
          %s123 = sand.u32 %s25, 1
          %s124 = scalar_lea.sflag [#allocation3], %s123
          %s125 = sand.u32 %s25, 1
          %s126 = smul.addr %s125, 8
          %s127 = scalar_lea.vmem [#allocation2], %s126
          %s129 = ssub.s32 128, 128
          %130 = vsyncadd %s124, %s129
          %s131 = smul.addr %s15, 128
          %s132 = scalar_lea.hbm %s0, %s131
          %s134 = sshll.u32 %s127, 4
          %s135 = int_to_ptr.vmem [resolvable:$true] %s134
          %137 = dma.hbm_to_vmem [thread:$0]  %s132, 128, %s135, %s124
        $region24: #{tpu_custom_call.1} parent=19 // pred_fallthru
          _
      $region20: #{tpu_custom_call.1} parent=5 // pred_fallthru
        _
      %p138 = scmp.le.s32.totalorder 1, %s15
      %p139 = scmp.lt.s32.totalorder %s15, 3
      %p140 = pnand %p138, %p139
      %p141 = pneg %p140
      // Predicated region
      $region25: #{tpu_custom_call.1} parent=5 // pred_check
        _
      $region26: #{tpu_custom_call.1} parent=5 // pred_check_branch
        %143 = sbr.rel (%p140) target = $region28
      $region27: #{tpu_custom_call.1} parent=5 // pred_region
        %s144 = ssub.s32 %s15, 1
        %s145 = sand.u32 %s28, 1
        %s146 = scalar_lea.sflag [#allocation3], %s145
        %s147 = sand.u32 %s28, 1
        %s148 = smul.addr %s147, 8
        %s149 = scalar_lea.vmem [#allocation2], %s148
        // Predicated region
        $region29: #{tpu_custom_call.1} parent=27 // pred_check
          %p150 = pneg %p41
        $region30: #{tpu_custom_call.1} parent=27 // pred_check_branch
          %152 = sbr.rel (%p150) target = $region32
        $region31: #{tpu_custom_call.1} parent=27 // pred_region
          %153 = dma.done %s146, 128
        $region32: #{tpu_custom_call.1} parent=27 // pred_fallthru
          _
        // Predicated region
        $region33: #{tpu_custom_call.1} parent=27 // pred_check
          %p154 = pneg %p62
        $region34: #{tpu_custom_call.1} parent=27 // pred_check_branch
          %156 = sbr.rel (%p154) target = $region36
        $region35: #{tpu_custom_call.1} parent=27 // pred_region
          %157 = dma.done [#allocation6], 2048
        $region36: #{tpu_custom_call.1} parent=27 // pred_fallthru
          _
        %s158 = sand.u32 %s28, 1
        %s159 = scalar_lea.sflag [#allocation3], %s158
        %s160 = sand.u32 %s28, 1
        %s161 = smul.addr %s160, 8
        %s162 = scalar_lea.vmem [#allocation2], %s161
        %p163 = pneg %p41
        %p164 = pneg %p38
        %p165 = pneg %p62
        %p166 = pneg %p59
        %p167 = pneg %p88
        %p168 = pneg %p85
        %s169 = sand.u32 %s75, 1
        %s170 = scalar_lea.sflag [#allocation4], %s169
        %s171 = sand.u32 %s75, 1
        %s172 = smul.addr %s171, 8
        %s173 = scalar_lea.vmem [#allocation7], %s172
        %v174 = vld [vmem:[%s149] sm:$0xff]
        %v175 = vld [vmem:[#allocation5] sm:$0xff]
        %v176 = vld [vmem:[#allocation5 + $0x8] sm:$0xff]
        %v177 = vld [vmem:[#allocation5 + $0x10] sm:$0xff]
        %v178 = vld [vmem:[#allocation5 + $0x18] sm:$0xff]
        %v179 = vld [vmem:[#allocation5 + $0x20] sm:$0xff]
        %v180 = vld [vmem:[#allocation5 + $0x28] sm:$0xff]
        %v181 = vld [vmem:[#allocation5 + $0x30] sm:$0xff]
        %v182 = vld [vmem:[#allocation5 + $0x38] sm:$0xff]
        %v183 = vld [vmem:[#allocation5 + $0x40] sm:$0xff]
        %v184 = vld [vmem:[#allocation5 + $0x48] sm:$0xff]
        %v185 = vld [vmem:[#allocation5 + $0x50] sm:$0xff]
        %v186 = vld [vmem:[#allocation5 + $0x58] sm:$0xff]
        %v187 = vld [vmem:[#allocation5 + $0x60] sm:$0xff]
        %v188 = vld [vmem:[#allocation5 + $0x68] sm:$0xff]
        %v189 = vld [vmem:[#allocation5 + $0x70] sm:$0xff]
        %v190 = vld [vmem:[#allocation5 + $0x78] sm:$0xff]
        %191 = vmatprep.subr.mxu0 0.0
        %192 = vmatpush1.msra.mxu0 %v175
        %193 = vmatprep.subr.mxu0 0.0
        %194 = vmatpush1.msra.mxu0 %v176
        %195 = vmatprep.subr.mxu0 0.0
        %196 = vmatpush1.msra.mxu0 %v177
        %197 = vmatprep.subr.mxu0 0.0
        %198 = vmatpush1.msra.mxu0 %v178
        %199 = vmatprep.subr.mxu0 0.0
        %200 = vmatpush1.msra.mxu0 %v179
        %201 = vmatprep.subr.mxu0 0.0
        %202 = vmatpush1.msra.mxu0 %v180
        %203 = vmatprep.subr.mxu0 0.0
        %204 = vmatpush1.msra.mxu0 %v181
        %205 = vmatprep.subr.mxu0 0.0
        %206 = vmatpush1.msra.mxu0 %v182
        %207 = vmatprep.subr.mxu0 0.0
        %208 = vmatpush1.msra.mxu0 %v183
        %209 = vmatprep.subr.mxu0 0.0
        %210 = vmatpush1.msra.mxu0 %v184
        %211 = vmatprep.subr.mxu0 0.0
        %212 = vmatpush1.msra.mxu0 %v185
        %213 = vmatprep.subr.mxu0 0.0
        %214 = vmatpush1.msra.mxu0 %v186
        %215 = vmatprep.subr.mxu0 0.0
        %216 = vmatpush1.msra.mxu0 %v187
        %217 = vmatprep.subr.mxu0 0.0
        %218 = vmatpush1.msra.mxu0 %v188
        %219 = vmatprep.subr.mxu0 0.0
        %220 = vmatpush1.msra.mxu0 %v189
        %221 = vmatprep.subr.mxu0 0.0
        %222 = vmatpush1.msra.mxu0 %v190
        %223 = vmatprep.subr.mxu0 0.0
        %224 = vmatpush1.msra.mxu0 0.0
        %225 = vmatprep.subr.mxu0 0.0
        %226 = vmatpush1.msra.mxu0 0.0
        %227 = vmatprep.subr.mxu0 0.0
        %228 = vmatpush1.msra.mxu0 0.0
        %229 = vmatprep.subr.mxu0 0.0
        %230 = vmatpush1.msra.mxu0 0.0
        %231 = vmatprep.subr.mxu0 0.0
        %232 = vmatpush1.msra.mxu0 0.0
        %233 = vmatprep.subr.mxu0 0.0
        %234 = vmatpush1.msra.mxu0 0.0
        %235 = vmatprep.subr.mxu0 0.0
        %236 = vmatpush1.msra.mxu0 0.0
        %237 = vmatprep.subr.mxu0 0.0
        %238 = vmatpush1.msra.mxu0 0.0
        %239 = vmatprep.subr.mxu0 0.0
        %240 = vmatpush1.msra.mxu0 0.0
        %241 = vmatprep.subr.mxu0 0.0
        %242 = vmatpush1.msra.mxu0 0.0
        %243 = vmatprep.subr.mxu0 0.0
        %244 = vmatpush1.msra.mxu0 0.0
        %245 = vmatprep.subr.mxu0 0.0
        %246 = vmatpush1.msra.mxu0 0.0
        %247 = vmatprep.subr.mxu0 0.0
        %248 = vmatpush1.msra.mxu0 0.0
        %249 = vmatprep.subr.mxu0 0.0
        %250 = vmatpush1.msra.mxu0 0.0
        %251 = vmatprep.subr.mxu0 0.0
        %252 = vmatpush1.msra.mxu0 0.0
        %253 = vmatprep.subr.mxu0 0.0
        %254 = vmatpush1.msra.mxu0 0.0
        %255 = vmatprep.mubr.f32.mxu0 0.0
        %256 = vmatmul.mubr.f32.gmra.mrb[0].mxu0 %v174
        %v257 = vpop.f32.mrb[0].mxu0
        %v258 = vadd.f32 0.0, %v257
        %v259 = vpop.f32.mrb[0].mxu0
        %260 = vdwg.mxu0
        %261 = vst [vmem:[%s173] sm:$0xff] %v258
        %s262 = sand.u32 %s75, 1
        %s263 = scalar_lea.sflag [#allocation4], %s262
        %s264 = sand.u32 %s75, 1
        %s265 = smul.addr %s264, 8
        %s266 = scalar_lea.vmem [#allocation7], %s265
        // Predicated region
        $region37: #{tpu_custom_call.1} parent=27 // pred_check
          %p267 = pneg %p85
        $region38: #{tpu_custom_call.1} parent=27 // pred_check_branch
          %269 = sbr.rel (%p267) target = $region40
        $region39: #{tpu_custom_call.1} parent=27 // pred_region
          %s271 = ssub.s32 128, 128
          %272 = vsyncadd %s263, %s271
          %s273 = smul.addr %s20, 128
          %s274 = scalar_lea.hbm %s2, %s273
          %s276 = sshll.u32 %s266, 4
          %s277 = int_to_ptr.vmem [resolvable:$true] %s276
          %279 = dma.vmem_to_hbm [thread:$0]  %s277, 128, %s274, %s263
        $region40: #{tpu_custom_call.1} parent=27 // pred_fallthru
          _
      $region28: #{tpu_custom_call.1} parent=5 // pred_fallthru
        _
      %p280 = scmp.le.s32.totalorder 2, %s15
      // Predicated region
      $region41: #{tpu_custom_call.1} parent=5 // pred_check
        %p281 = pneg %p280
      $region42: #{tpu_custom_call.1} parent=5 // pred_check_branch
        %283 = sbr.rel (%p281) target = $region44
      $region43: #{tpu_custom_call.1} parent=5 // pred_region
        %s284 = ssub.s32 %s15, 2
        // Predicated region
        $region45: #{tpu_custom_call.1} parent=43 // pred_check
          %p285 = pneg %p91
        $region46: #{tpu_custom_call.1} parent=43 // pred_check_branch
          %287 = sbr.rel (%p285) target = $region48
        $region47: #{tpu_custom_call.1} parent=43 // pred_region
          %s288 = sand.u32 %s76, 1
          %s289 = scalar_lea.sflag [#allocation4], %s288
          %s290 = sand.u32 %s76, 1
          %s291 = smul.addr %s290, 8
          %s292 = scalar_lea.vmem [#allocation7], %s291
          %293 = dma.done %s289, 128
        $region48: #{tpu_custom_call.1} parent=43 // pred_fallthru
          _
      $region44: #{tpu_custom_call.1} parent=5 // pred_fallthru
        _
    $region6: #{tpu_custom_call.1} parent=1 // loop_footer
      %s19 = sadd.s32 1, %s15
    $region7: #{tpu_custom_call.1} parent=1 // loop_footer_branch
      %14 = sbr.rel target = $region3
    $region8: #{tpu_custom_call.1} parent=1 // loop_exit
      _
    %294 = vsyncpa [#allocation3], 1
    %s295 = scalar_lea.sflag [#allocation3], 1
    %296 = vsyncpa %s295, 1
    %297 = vsyncpa [#allocation6], 1
    %298 = vsyncpa [#allocation4], 1
    %s299 = scalar_lea.sflag [#allocation4], 1
    %300 = vsyncpa %s299, 1

// kernel: tpu_custom_call.1
$region0: #{tpu_custom_call.1}
  #allocation0 [shape = 'u32[]', space=smem, size = 0x4, offset = 0x4, fixed_abs, tag = 'smem constant byte address 0x4 - core index']
  #allocation1 [shape = 'u32[144,128]{1,0:T(1,128)}', space=vmem, size = 0x12000, scoped, tag = 'internal scratch']
  %s0 = inlined_call_operand.vmem [shape: f32[16,16], index: 0, kind: input, shape index: {}]
  %s1 = inlined_call_operand.hbm [shape: f32[16,32], index: 1, kind: input, shape index: {}]
  %s2 = inlined_call_operand.vmem [shape: f32[1,32], index: 2, kind: input, shape index: {}]
  %s3 = inlined_call_operand.vmem [shape: f32[32,32], index: 3, kind: input, shape index: {}]
  %s4 = inlined_call_operand.vmem [shape: f32[1,32], index: 4, kind: input, shape index: {}]
  %s5 = inlined_call_operand.hbm [shape: f32[32,32], index: 5, kind: input, shape index: {}]
  %s6 = inlined_call_operand.vmem [shape: f32[1,32], index: 6, kind: input, shape index: {}]
  %s7 = inlined_call_operand.vmem [shape: f32[32,8], index: 7, kind: input, shape index: {}]
  %s8 = inlined_call_operand.vmem [shape: f32[1,8], index: 8, kind: input, shape index: {}]
  %s9 = inlined_call_operand.vmem [shape: f32[16,8], index: 9, kind: output, shape index: {}]
  %s10 = sld [smem:[#allocation0]]
  $region54: #{tpu_custom_call.1} parent=0
    _
  %s12 = ssub.s32 1, %s10
  %s13 = scalar_select 0, %s12, %s10
  $region1: #{tpu_custom_call.1} parent=0
    #allocation2 [shape = 'u8[8192]{0}', space=vmem, size = 0x2000, scoped, tag = 'input window, operand 1, single buffered']
    #allocation3 [shape = 's32[1]{0}', space=sflag, size = 0x4, scoped, tag = 'scoped memory for tpu_custom_call.1']
    #allocation4 [shape = 'u8[16384]{0}', space=vmem, size = 0x4000, scoped, tag = 'input window, operand 5, single buffered']
    #allocation5 [shape = 's32[1]{0}', space=sflag, size = 0x4, scoped, tag = 'scoped memory for tpu_custom_call.1']
    %14 = vsyncpa [#allocation3], 0
    %15 = vsyncpa [#allocation5], 0
    // Predicated region
    $region2: #{tpu_custom_call.1} parent=1 // pred_check
      _
    $region3: #{tpu_custom_call.1} parent=1 // pred_check_branch
      %17 = sbr.rel (0) target = $region5
    $region4: #{tpu_custom_call.1} parent=1 // pred_region
      _
    $region5: #{tpu_custom_call.1} parent=1 // pred_fallthru
      _
    // Predicated region
    $region6: #{tpu_custom_call.1} parent=1 // pred_check
      _
    $region7: #{tpu_custom_call.1} parent=1 // pred_check_branch
      %19 = sbr.rel (0) target = $region9
    $region8: #{tpu_custom_call.1} parent=1 // pred_region
      %s21 = ssub.s32 256, 256
      %22 = vsyncadd [#allocation3], %s21
      %s23 = sshll.u32 [#allocation2], 4
      %s24 = int_to_ptr.vmem [resolvable:$true] %s23
      %29 = dma.hbm_to_vmem [thread:$0]  %s1, 256, %s24, [#allocation3], 128, 128, 8
    $region9: #{tpu_custom_call.1} parent=1 // pred_fallthru
      _
    // Predicated region
    $region10: #{tpu_custom_call.1} parent=1 // pred_check
      _
    $region11: #{tpu_custom_call.1} parent=1 // pred_check_branch
      %31 = sbr.rel (0) target = $region13
    $region12: #{tpu_custom_call.1} parent=1 // pred_region
      _
    $region13: #{tpu_custom_call.1} parent=1 // pred_fallthru
      _
    // Predicated region
    $region14: #{tpu_custom_call.1} parent=1 // pred_check
      _
    $region15: #{tpu_custom_call.1} parent=1 // pred_check_branch
      %33 = sbr.rel (0) target = $region17
    $region16: #{tpu_custom_call.1} parent=1 // pred_region
      _
    $region17: #{tpu_custom_call.1} parent=1 // pred_fallthru
      _
    // Predicated region
    $region18: #{tpu_custom_call.1} parent=1 // pred_check
      _
    $region19: #{tpu_custom_call.1} parent=1 // pred_check_branch
      %35 = sbr.rel (0) target = $region21
    $region20: #{tpu_custom_call.1} parent=1 // pred_region
      _
    $region21: #{tpu_custom_call.1} parent=1 // pred_fallthru
      _
    // Predicated region
    $region22: #{tpu_custom_call.1} parent=1 // pred_check
      _
    $region23: #{tpu_custom_call.1} parent=1 // pred_check_branch
      %37 = sbr.rel (0) target = $region25
    $region24: #{tpu_custom_call.1} parent=1 // pred_region
      %s39 = ssub.s32 512, 512
      %40 = vsyncadd [#allocation5], %s39
      %s41 = sshll.u32 [#allocation4], 4
      %s42 = int_to_ptr.vmem [resolvable:$true] %s41
      %47 = dma.hbm_to_vmem [thread:$0]  %s5, 512, %s42, [#allocation5], 128, 128, 8
    $region25: #{tpu_custom_call.1} parent=1 // pred_fallthru
      _
    // Predicated region
    $region26: #{tpu_custom_call.1} parent=1 // pred_check
      _
    $region27: #{tpu_custom_call.1} parent=1 // pred_check_branch
      %49 = sbr.rel (0) target = $region29
    $region28: #{tpu_custom_call.1} parent=1 // pred_region
      _
    $region29: #{tpu_custom_call.1} parent=1 // pred_fallthru
      _
    // Predicated region
    $region30: #{tpu_custom_call.1} parent=1 // pred_check
      _
    $region31: #{tpu_custom_call.1} parent=1 // pred_check_branch
      %51 = sbr.rel (0) target = $region33
    $region32: #{tpu_custom_call.1} parent=1 // pred_region
      _
    $region33: #{tpu_custom_call.1} parent=1 // pred_fallthru
      _
    // Predicated region
    $region34: #{tpu_custom_call.1} parent=1 // pred_check
      _
    $region35: #{tpu_custom_call.1} parent=1 // pred_check_branch
      %53 = sbr.rel (0) target = $region37
    $region36: #{tpu_custom_call.1} parent=1 // pred_region
      _
    $region37: #{tpu_custom_call.1} parent=1 // pred_fallthru
      _
    // Predicated region
    $region38: #{tpu_custom_call.1} parent=1 // pred_check
      _
    $region39: #{tpu_custom_call.1} parent=1 // pred_check_branch
      %55 = sbr.rel (0) target = $region41
    $region40: #{tpu_custom_call.1} parent=1 // pred_region
      %56 = dma.done [#allocation3], 256
    $region41: #{tpu_custom_call.1} parent=1 // pred_fallthru
      _
    // Predicated region
    $region42: #{tpu_custom_call.1} parent=1 // pred_check
      _
    $region43: #{tpu_custom_call.1} parent=1 // pred_check_branch
      %58 = sbr.rel (0) target = $region45
    $region44: #{tpu_custom_call.1} parent=1 // pred_region
      %59 = dma.done [#allocation5], 512
    $region45: #{tpu_custom_call.1} parent=1 // pred_fallthru
      _
    %v60 = vld [vmem:[%s0] sm:$0xff]
    %v61 = vld [vmem:[%s0 + $0x8] sm:$0xff]
    %v62 = vld [vmem:[#allocation2] sm:$0xff]
    %v63 = vld [vmem:[#allocation2 + $0x8] sm:$0xff]
    %v64 = vld [vmem:[%s2] sm:$0x1]
    %v66 = vlaneseq
    %v67 = vshrl.u32 %v66, 7
    %v68 = vsub.s32 0, %v67
    %v69 = vrot.slane %v64, %v68
    %vm71 = vcmask 130048
    %v73 = vsel %vm71, %v60, 0
    %v76 = vsel %vm71, %v61, 0
    %78 = vmatprep.subr.mxu0 0.0
    %79 = vmatpush1.msra.mxu0 %v62
    %80 = vmatprep.subr.mxu0 0.0
    %81 = vmatpush1.msra.mxu0 %v63
    %82 = vmatprep.subr.mxu0 0.0
    %83 = vmatpush1.msra.mxu0 0.0
    %84 = vmatprep.subr.mxu0 0.0
    %85 = vmatpush1.msra.mxu0 0.0
    %86 = vmatprep.subr.mxu0 0.0
    %87 = vmatpush1.msra.mxu0 0.0
    %88 = vmatprep.subr.mxu0 0.0
    %89 = vmatpush1.msra.mxu0 0.0
    %90 = vmatprep.subr.mxu0 0.0
    %91 = vmatpush1.msra.mxu0 0.0
    %92 = vmatprep.subr.mxu0 0.0
    %93 = vmatpush1.msra.mxu0 0.0
    %94 = vmatprep.subr.mxu0 0.0
    %95 = vmatpush1.msra.mxu0 0.0
    %96 = vmatprep.subr.mxu0 0.0
    %97 = vmatpush1.msra.mxu0 0.0
    %98 = vmatprep.subr.mxu0 0.0
    %99 = vmatpush1.msra.mxu0 0.0
    %100 = vmatprep.subr.mxu0 0.0
    %101 = vmatpush1.msra.mxu0 0.0
    %102 = vmatprep.subr.mxu0 0.0
    %103 = vmatpush1.msra.mxu0 0.0
    %104 = vmatprep.subr.mxu0 0.0
    %105 = vmatpush1.msra.mxu0 0.0
    %106 = vmatprep.subr.mxu0 0.0
    %107 = vmatpush1.msra.mxu0 0.0
    %108 = vmatprep.subr.mxu0 0.0
    %109 = vmatpush1.msra.mxu0 0.0
    %110 = vmatprep.subr.mxu0 0.0
    %111 = vmatpush1.msra.mxu0 0.0
    %112 = vmatprep.subr.mxu0 0.0
    %113 = vmatpush1.msra.mxu0 0.0
    %114 = vmatprep.subr.mxu0 0.0
    %115 = vmatpush1.msra.mxu0 0.0
    %116 = vmatprep.subr.mxu0 0.0
    %117 = vmatpush1.msra.mxu0 0.0
    %118 = vmatprep.subr.mxu0 0.0
    %119 = vmatpush1.msra.mxu0 0.0
    %120 = vmatprep.subr.mxu0 0.0
    %121 = vmatpush1.msra.mxu0 0.0
    %122 = vmatprep.subr.mxu0 0.0
    %123 = vmatpush1.msra.mxu0 0.0
    %124 = vmatprep.subr.mxu0 0.0
    %125 = vmatpush1.msra.mxu0 0.0
    %126 = vmatprep.subr.mxu0 0.0
    %127 = vmatpush1.msra.mxu0 0.0
    %128 = vmatprep.subr.mxu0 0.0
    %129 = vmatpush1.msra.mxu0 0.0
    %130 = vmatprep.subr.mxu0 0.0
    %131 = vmatpush1.msra.mxu0 0.0
    %132 = vmatprep.subr.mxu0 0.0
    %133 = vmatpush1.msra.mxu0 0.0
    %134 = vmatprep.subr.mxu0 0.0
    %135 = vmatpush1.msra.mxu0 0.0
    %136 = vmatprep.subr.mxu0 0.0
    %137 = vmatpush1.msra.mxu0 0.0
    %138 = vmatprep.subr.mxu0 0.0
    %139 = vmatpush1.msra.mxu0 0.0
    %140 = vmatprep.subr.mxu0 0.0
    %141 = vmatpush1.msra.mxu0 0.0
    %142 = vmatprep.mubr.f32.mxu0 0.0
    %143 = vmatmul.mubr.f32.gmra.mrb[0].mxu0 %v73
    %v144 = vpop.f32.mrb[0].mxu0
    %v145 = vadd.f32 %v69, %v144
    %v146 = vpop.f32.mrb[0].mxu0
    %147 = vmatprep.mubr.f32.mxu0 0.0
    %148 = vmatmul.mubr.f32.gmra.mrb[0].mxu0 %v76
    %v149 = vpop.f32.mrb[0].mxu0
    %v150 = vadd.f32 %v69, %v149
    %v151 = vpop.f32.mrb[0].mxu0
    %152 = vdwg.mxu0
    %v153 = vmax.f32 %v145, 0.0
    %v154 = vmax.f32 %v150, 0.0
    %v155 = vld [vmem:[%s3] sm:$0xff]
    %v156 = vld [vmem:[%s3 + $0x8] sm:$0xff]
    %v157 = vld [vmem:[%s3 + $0x10] sm:$0xff]
    %v158 = vld [vmem:[%s3 + $0x18] sm:$0xff]
    %v159 = vld [vmem:[%s4] sm:$0x1]
    %v161 = vlaneseq
    %v162 = vshrl.u32 %v161, 7
    %v163 = vsub.s32 0, %v162
    %v164 = vrot.slane %v159, %v163
    %vm166 = vcmask 261120
    %v168 = vsel %vm166, %v153, 0
    %v171 = vsel %vm166, %v154, 0
    %173 = vmatprep.subr.mxu0 0.0
    %174 = vmatpush1.msra.mxu0 %v155
    %175 = vmatprep.subr.mxu0 0.0
    %176 = vmatpush1.msra.mxu0 %v156
    %177 = vmatprep.subr.mxu0 0.0
    %178 = vmatpush1.msra.mxu0 %v157
    %179 = vmatprep.subr.mxu0 0.0
    %180 = vmatpush1.msra.mxu0 %v158
    %181 = vmatprep.subr.mxu0 0.0
    %182 = vmatpush1.msra.mxu0 0.0
    %183 = vmatprep.subr.mxu0 0.0
    %184 = vmatpush1.msra.mxu0 0.0
    %185 = vmatprep.subr.mxu0 0.0
    %186 = vmatpush1.msra.mxu0 0.0
    %187 = vmatprep.subr.mxu0 0.0
    %188 = vmatpush1.msra.mxu0 0.0
    %189 = vmatprep.subr.mxu0 0.0
    %190 = vmatpush1.msra.mxu0 0.0
    %191 = vmatprep.subr.mxu0 0.0
    %192 = vmatpush1.msra.mxu0 0.0
    %193 = vmatprep.subr.mxu0 0.0
    %194 = vmatpush1.msra.mxu0 0.0
    %195 = vmatprep.subr.mxu0 0.0
    %196 = vmatpush1.msra.mxu0 0.0
    %197 = vmatprep.subr.mxu0 0.0
    %198 = vmatpush1.msra.mxu0 0.0
    %199 = vmatprep.subr.mxu0 0.0
    %200 = vmatpush1.msra.mxu0 0.0
    %201 = vmatprep.subr.mxu0 0.0
    %202 = vmatpush1.msra.mxu0 0.0
    %203 = vmatprep.subr.mxu0 0.0
    %204 = vmatpush1.msra.mxu0 0.0
    %205 = vmatprep.subr.mxu0 0.0
    %206 = vmatpush1.msra.mxu0 0.0
    %207 = vmatprep.subr.mxu0 0.0
    %208 = vmatpush1.msra.mxu0 0.0
    %209 = vmatprep.subr.mxu0 0.0
    %210 = vmatpush1.msra.mxu0 0.0
    %211 = vmatprep.subr.mxu0 0.0
    %212 = vmatpush1.msra.mxu0 0.0
    %213 = vmatprep.subr.mxu0 0.0
    %214 = vmatpush1.msra.mxu0 0.0
    %215 = vmatprep.subr.mxu0 0.0
    %216 = vmatpush1.msra.mxu0 0.0
    %217 = vmatprep.subr.mxu0 0.0
    %218 = vmatpush1.msra.mxu0 0.0
    %219 = vmatprep.subr.mxu0 0.0
    %220 = vmatpush1.msra.mxu0 0.0
    %221 = vmatprep.subr.mxu0 0.0
    %222 = vmatpush1.msra.mxu0 0.0
    %223 = vmatprep.subr.mxu0 0.0
    %224 = vmatpush1.msra.mxu0 0.0
    %225 = vmatprep.subr.mxu0 0.0
    %226 = vmatpush1.msra.mxu0 0.0
    %227 = vmatprep.subr.mxu0 0.0
    %228 = vmatpush1.msra.mxu0 0.0
    %229 = vmatprep.subr.mxu0 0.0
    %230 = vmatpush1.msra.mxu0 0.0
    %231 = vmatprep.subr.mxu0 0.0
    %232 = vmatpush1.msra.mxu0 0.0
    %233 = vmatprep.subr.mxu0 0.0
    %234 = vmatpush1.msra.mxu0 0.0
    %235 = vmatprep.subr.mxu0 0.0
    %236 = vmatpush1.msra.mxu0 0.0
    %237 = vmatprep.mubr.f32.mxu0 0.0
    %238 = vmatmul.mubr.f32.gmra.mrb[0].mxu0 %v168
    %v239 = vpop.f32.mrb[0].mxu0
    %v240 = vadd.f32 %v164, %v239
    %v241 = vpop.f32.mrb[0].mxu0
    %242 = vmatprep.mubr.f32.mxu0 0.0
    %243 = vmatmul.mubr.f32.gmra.mrb[0].mxu0 %v171
    %v244 = vpop.f32.mrb[0].mxu0
    %v245 = vadd.f32 %v164, %v244
    %v246 = vpop.f32.mrb[0].mxu0
    %247 = vdwg.mxu0
    %v248 = vmax.f32 %v240, 0.0
    %v249 = vmax.f32 %v245, 0.0
    %v250 = vld [vmem:[#allocation4] sm:$0xff]
    %v251 = vld [vmem:[#allocation4 + $0x8] sm:$0xff]
    %v252 = vld [vmem:[#allocation4 + $0x10] sm:$0xff]
    %v253 = vld [vmem:[#allocation4 + $0x18] sm:$0xff]
    %v254 = vld [vmem:[%s6] sm:$0x1]
    %v256 = vlaneseq
    %v257 = vshrl.u32 %v256, 7
    %v258 = vsub.s32 0, %v257
    %v259 = vrot.slane %v254, %v258
    %v262 = vsel %vm166, %v248, 0
    %v265 = vsel %vm166, %v249, 0
    %267 = vmatprep.subr.mxu0 0.0
    %268 = vmatpush1.msra.mxu0 %v250
    %269 = vmatprep.subr.mxu0 0.0
    %270 = vmatpush1.msra.mxu0 %v251
    %271 = vmatprep.subr.mxu0 0.0
    %272 = vmatpush1.msra.mxu0 %v252
    %273 = vmatprep.subr.mxu0 0.0
    %274 = vmatpush1.msra.mxu0 %v253
    %275 = vmatprep.subr.mxu0 0.0
    %276 = vmatpush1.msra.mxu0 0.0
    %277 = vmatprep.subr.mxu0 0.0
    %278 = vmatpush1.msra.mxu0 0.0
    %279 = vmatprep.subr.mxu0 0.0
    %280 = vmatpush1.msra.mxu0 0.0
    %281 = vmatprep.subr.mxu0 0.0
    %282 = vmatpush1.msra.mxu0 0.0
    %283 = vmatprep.subr.mxu0 0.0
    %284 = vmatpush1.msra.mxu0 0.0
    %285 = vmatprep.subr.mxu0 0.0
    %286 = vmatpush1.msra.mxu0 0.0
    %287 = vmatprep.subr.mxu0 0.0
    %288 = vmatpush1.msra.mxu0 0.0
    %289 = vmatprep.subr.mxu0 0.0
    %290 = vmatpush1.msra.mxu0 0.0
    %291 = vmatprep.subr.mxu0 0.0
    %292 = vmatpush1.msra.mxu0 0.0
    %293 = vmatprep.subr.mxu0 0.0
    %294 = vmatpush1.msra.mxu0 0.0
    %295 = vmatprep.subr.mxu0 0.0
    %296 = vmatpush1.msra.mxu0 0.0
    %297 = vmatprep.subr.mxu0 0.0
    %298 = vmatpush1.msra.mxu0 0.0
    %299 = vmatprep.subr.mxu0 0.0
    %300 = vmatpush1.msra.mxu0 0.0
    %301 = vmatprep.subr.mxu0 0.0
    %302 = vmatpush1.msra.mxu0 0.0
    %303 = vmatprep.subr.mxu0 0.0
    %304 = vmatpush1.msra.mxu0 0.0
    %305 = vmatprep.subr.mxu0 0.0
    %306 = vmatpush1.msra.mxu0 0.0
    %307 = vmatprep.subr.mxu0 0.0
    %308 = vmatpush1.msra.mxu0 0.0
    %309 = vmatprep.subr.mxu0 0.0
    %310 = vmatpush1.msra.mxu0 0.0
    %311 = vmatprep.subr.mxu0 0.0
    %312 = vmatpush1.msra.mxu0 0.0
    %313 = vmatprep.subr.mxu0 0.0
    %314 = vmatpush1.msra.mxu0 0.0
    %315 = vmatprep.subr.mxu0 0.0
    %316 = vmatpush1.msra.mxu0 0.0
    %317 = vmatprep.subr.mxu0 0.0
    %318 = vmatpush1.msra.mxu0 0.0
    %319 = vmatprep.subr.mxu0 0.0
    %320 = vmatpush1.msra.mxu0 0.0
    %321 = vmatprep.subr.mxu0 0.0
    %322 = vmatpush1.msra.mxu0 0.0
    %323 = vmatprep.subr.mxu0 0.0
    %324 = vmatpush1.msra.mxu0 0.0
    %325 = vmatprep.subr.mxu0 0.0
    %326 = vmatpush1.msra.mxu0 0.0
    %327 = vmatprep.subr.mxu0 0.0
    %328 = vmatpush1.msra.mxu0 0.0
    %329 = vmatprep.subr.mxu0 0.0
    %330 = vmatpush1.msra.mxu0 0.0
    %331 = vmatprep.mubr.f32.mxu0 0.0
    %332 = vmatmul.mubr.f32.gmra.mrb[0].mxu0 %v262
    %v333 = vpop.f32.mrb[0].mxu0
    %v334 = vadd.f32 %v259, %v333
    %v335 = vpop.f32.mrb[0].mxu0
    %336 = vmatprep.mubr.f32.mxu0 0.0
    %337 = vmatmul.mubr.f32.gmra.mrb[0].mxu0 %v265
    %v338 = vpop.f32.mrb[0].mxu0
    %v339 = vadd.f32 %v259, %v338
    %v340 = vpop.f32.mrb[0].mxu0
    %341 = vdwg.mxu0
    %v342 = vmax.f32 %v334, 0.0
    %v343 = vmax.f32 %v339, 0.0
    %v344 = vld [vmem:[%s7] sm:$0xff]
    %v345 = vld [vmem:[%s7 + $0x8] sm:$0xff]
    %v346 = vld [vmem:[%s7 + $0x10] sm:$0xff]
    %v347 = vld [vmem:[%s7 + $0x18] sm:$0xff]
    %v348 = vld [vmem:[%s8] sm:$0x1]
    %v350 = vlaneseq
    %v351 = vshrl.u32 %v350, 7
    %v352 = vsub.s32 0, %v351
    %v353 = vrot.slane %v348, %v352
    %v356 = vsel %vm166, %v342, 0
    %v359 = vsel %vm166, %v343, 0
    %361 = vmatprep.subr.mxu0 0.0
    %362 = vmatpush1.msra.mxu0 %v344
    %363 = vmatprep.subr.mxu0 0.0
    %364 = vmatpush1.msra.mxu0 %v345
    %365 = vmatprep.subr.mxu0 0.0
    %366 = vmatpush1.msra.mxu0 %v346
    %367 = vmatprep.subr.mxu0 0.0
    %368 = vmatpush1.msra.mxu0 %v347
    %369 = vmatprep.subr.mxu0 0.0
    %370 = vmatpush1.msra.mxu0 0.0
    %371 = vmatprep.subr.mxu0 0.0
    %372 = vmatpush1.msra.mxu0 0.0
    %373 = vmatprep.subr.mxu0 0.0
    %374 = vmatpush1.msra.mxu0 0.0
    %375 = vmatprep.subr.mxu0 0.0
    %376 = vmatpush1.msra.mxu0 0.0
    %377 = vmatprep.subr.mxu0 0.0
    %378 = vmatpush1.msra.mxu0 0.0
    %379 = vmatprep.subr.mxu0 0.0
    %380 = vmatpush1.msra.mxu0 0.0
    %381 = vmatprep.subr.mxu0 0.0
    %382 = vmatpush1.msra.mxu0 0.0
    %383 = vmatprep.subr.mxu0 0.0
    %384 = vmatpush1.msra.mxu0 0.0
    %385 = vmatprep.subr.mxu0 0.0
    %386 = vmatpush1.msra.mxu0 0.0
    %387 = vmatprep.subr.mxu0 0.0
    %388 = vmatpush1.msra.mxu0 0.0
    %389 = vmatprep.subr.mxu0 0.0
    %390 = vmatpush1.msra.mxu0 0.0
    %391 = vmatprep.subr.mxu0 0.0
    %392 = vmatpush1.msra.mxu0 0.0
    %393 = vmatprep.subr.mxu0 0.0
    %394 = vmatpush1.msra.mxu0 0.0
    %395 = vmatprep.subr.mxu0 0.0
    %396 = vmatpush1.msra.mxu0 0.0
    %397 = vmatprep.subr.mxu0 0.0
    %398 = vmatpush1.msra.mxu0 0.0
    %399 = vmatprep.subr.mxu0 0.0
    %400 = vmatpush1.msra.mxu0 0.0
    %401 = vmatprep.subr.mxu0 0.0
    %402 = vmatpush1.msra.mxu0 0.0
    %403 = vmatprep.subr.mxu0 0.0
    %404 = vmatpush1.msra.mxu0 0.0
    %405 = vmatprep.subr.mxu0 0.0
    %406 = vmatpush1.msra.mxu0 0.0
    %407 = vmatprep.subr.mxu0 0.0
    %408 = vmatpush1.msra.mxu0 0.0
    %409 = vmatprep.subr.mxu0 0.0
    %410 = vmatpush1.msra.mxu0 0.0
    %411 = vmatprep.subr.mxu0 0.0
    %412 = vmatpush1.msra.mxu0 0.0
    %413 = vmatprep.subr.mxu0 0.0
    %414 = vmatpush1.msra.mxu0 0.0
    %415 = vmatprep.subr.mxu0 0.0
    %416 = vmatpush1.msra.mxu0 0.0
    %417 = vmatprep.subr.mxu0 0.0
    %418 = vmatpush1.msra.mxu0 0.0
    %419 = vmatprep.subr.mxu0 0.0
    %420 = vmatpush1.msra.mxu0 0.0
    %421 = vmatprep.subr.mxu0 0.0
    %422 = vmatpush1.msra.mxu0 0.0
    %423 = vmatprep.subr.mxu0 0.0
    %424 = vmatpush1.msra.mxu0 0.0
    %425 = vmatprep.mubr.f32.mxu0 0.0
    %426 = vmatmul.mubr.f32.gmra.mrb[0].mxu0 %v356
    %v427 = vpop.f32.mrb[0].mxu0
    %v428 = vadd.f32 %v353, %v427
    %v429 = vpop.f32.mrb[0].mxu0
    %430 = vmatprep.mubr.f32.mxu0 0.0
    %431 = vmatmul.mubr.f32.gmra.mrb[0].mxu0 %v359
    %v432 = vpop.f32.mrb[0].mxu0
    %v433 = vadd.f32 %v353, %v432
    %v434 = vpop.f32.mrb[0].mxu0
    %435 = vdwg.mxu0
    %v436 = vtanh.pop %v428
    %v437 = vtanh.pop %v433
    %vm438 = vcmask 64512
    %439 = vst.msk [vmem:[%s9] sm:$0xff] %vm438, %v436
    %440 = vst.msk [vmem:[%s9 + $0x8] sm:$0xff] %vm438, %v437
    // Predicated region
    $region46: #{tpu_custom_call.1} parent=1 // pred_check
      _
    $region47: #{tpu_custom_call.1} parent=1 // pred_check_branch
      %442 = sbr.rel (0) target = $region49
    $region48: #{tpu_custom_call.1} parent=1 // pred_region
      _
    $region49: #{tpu_custom_call.1} parent=1 // pred_fallthru
      _
    // Predicated region
    $region50: #{tpu_custom_call.1} parent=1 // pred_check
      _
    $region51: #{tpu_custom_call.1} parent=1 // pred_check_branch
      %444 = sbr.rel (0) target = $region53
    $region52: #{tpu_custom_call.1} parent=1 // pred_region
      _
    $region53: #{tpu_custom_call.1} parent=1 // pred_fallthru
      _
    %445 = vsyncpa [#allocation3], 1
    %446 = vsyncpa [#allocation5], 1

</llo_original>
